<compile_context>
chip_gen: v7x
topology: tpu7x:2x2x1
jax: 0.10.0
libtpu: 0.0.40
codegen_flags: <defaults>
</compile_context>

<pallas_src>
import math
import numpy as np
import jax
import jax.numpy as jnp
from jax.experimental import pallas as pl
from jax.experimental.pallas import tpu as pltpu


def make_positional_encoding_table(d_model: int, max_len: int = 5000,
                                   dtype=jnp.float32) -> jnp.ndarray:
    """Deterministic sinusoidal table, identical to the torch __init__: shape (1, max_len, d_model).

    For bf16 activation pipelines pass dtype=jnp.bfloat16 to halve the table's HBM/VMEM traffic.
    """
    pos = np.arange(0, max_len, dtype=np.float32)[:, None]                       # (max_len, 1)
    div = np.exp(np.arange(0, d_model, 2, dtype=np.float32) * (-np.log(10000.0) / d_model))
    pe = np.zeros((max_len, d_model), dtype=np.float32)
    pe[:, 0::2] = np.sin(pos * div)
    pe[:, 1::2] = np.cos(pos * div)
    return jnp.asarray(pe[None, :, :], dtype=dtype)                              # (1, max_len, d_model)


def _pos_enc_kernel(x_ref, pe_ref, o_ref):
    # Compute in f32 (matches torch promotion for bf16 x + f32 pe); for f32/f32 the casts
    # are no-ops. Pure VPU work — free under HBM slack.
    o_ref[...] = (x_ref[...].astype(jnp.float32)
                  + pe_ref[...].astype(jnp.float32)).astype(o_ref.dtype)


# Packed-sublane alignment requirement per element size (f32: 8, bf16: 16, int8/fp8: 32).
_SUBLANE = {4: 8, 2: 16, 1: 32}


def _vmem_capacity_bytes() -> int:
    """Per-core VMEM capacity; conservative 64 MiB (v7x) fallback if the query fails."""
    try:
        v = int(getattr(pltpu.get_tpu_info(), "vmem_capacity_bytes", 0) or 0)
        if v > 0:
            return v
    except Exception:
        pass
    return 64 << 20


def _choose_rows(S: int, row_bytes: int, target_bytes: int, align: int) -> int:
    """Largest row-tile so one block is ~<= target_bytes, preferring aligned divisors of S."""
    max_rows = max(align, target_bytes // max(1, row_bytes))
    if S <= max_rows:
        return S
    t = (max_rows // align) * align
    while t >= align:
        if S % t == 0:
            return t
        t -= align
    # No aligned divisor: ragged tiling; Pallas masks the edge block.
    return max(align, (max_rows // align) * align)


def _vmem_limit_for(block_bytes: int) -> int:
    # 3 operands x 2 buffers + headroom for compiler-internal scratch; never above 96 MiB.
    return int(min(96 << 20, max(32 << 20, 6 * block_bytes + (16 << 20))))


def _pos_enc_3d(x, pe_table, out_dtype, target_bytes, donate_x):
    """Fast path for D a multiple of 128: (B, S, D) tiled along S, batch in the grid."""
    B, S, D = x.shape
    max_len = pe_table.shape[1]
    out_itemsize = jnp.dtype(out_dtype).itemsize
    min_itemsize = min(jnp.dtype(x.dtype).itemsize, jnp.dtype(pe_table.dtype).itemsize)
    align = _SUBLANE.get(min_itemsize, 8)

    tS = _choose_rows(S, D * out_itemsize, target_bytes, align)
    num_s = pl.cdiv(S, tS)

    pe_in = pe_table
    if (tS == S and S % align != 0 and S != max_len) or (num_s * tS > max_len):
        # (a) single unaligned full-seq tile: pe block must equal pe's full dims;
        # (b) ragged coverage past the table: slice so the pe edge block is masked like x.
        pe_in = pe_table[:, :S, :]

    block_bytes = tS * D * out_itemsize
    cost = pl.CostEstimate(
        flops=B * S * D,
        transcendentals=0,
        bytes_accessed=B * S * D * (jnp.dtype(x.dtype).itemsize + out_itemsize)
                       + S * D * jnp.dtype(pe_in.dtype).itemsize,
    )
    alias = {0: 0} if (donate_x and x.dtype == out_dtype) else {}

    return pl.pallas_call(
        _pos_enc_kernel,
        out_shape=jax.ShapeDtypeStruct((B, S, D), out_dtype),
        grid_spec=pltpu.PrefetchScalarGridSpec(
            num_scalar_prefetch=0,
            # seq-tile axis OUTER, batch INNER: pe block index constant across inner steps
            # -> its re-DMA is elided (pe read once per seq tile, not once per (tile, batch)).
            grid=(num_s, B),
            in_specs=[
                pl.BlockSpec((None, tS, D), lambda s, b: (b, s, 0)),   # x tile
                pl.BlockSpec((None, tS, D), lambda s, b: (0, s, 0)),   # pe tile (batch-broadcast)
            ],
            out_specs=pl.BlockSpec((None, tS, D), lambda s, b: (b, s, 0)),
        ),
        compiler_params=pltpu.CompilerParams(
            # Pin the v7x megacore split to the (long) sequence axis; no-op on v5e/v6e.
            dimension_semantics=("parallel", "arbitrary"),
            vmem_limit_bytes=_vmem_limit_for(block_bytes),
        ),
        cost_estimate=cost,
        input_output_aliases=alias,
    )(x, pe_in)


def _pos_enc_folded(x, pe_table, out_dtype, target_bytes, donate_x):
    """Lane-dense path for D not a multiple of 128: fold D into the lane axis."""
    B, S, D = x.shape
    max_len = pe_table.shape[1]
    out_itemsize = jnp.dtype(out_dtype).itemsize

    unit = 128 // math.gcd(128, D)          # smallest row count whose folded width % 128 == 0
    tS = _choose_rows(S, B * D * out_itemsize, target_bytes, unit)
    num_s = pl.cdiv(S, tS)
    L = tS * D                              # folded block width (lane axis)

    # Slice pe when (a) the folded width isn't lane-aligned (then tS == S and the pe block must
    # equal pe's full dims), or (b) ragged coverage would index past the table.
    pe_src = pe_table
    if (L % 128 != 0) or (num_s * tS > max_len):
        pe_src = pe_table[:, :S, :]
    pe_flat = pe_src.reshape(1, pe_src.shape[1] * D)
    x_flat = x.reshape(B, S * D)

    block_bytes = B * L * out_itemsize
    cost = pl.CostEstimate(
        flops=B * S * D,
        transcendentals=0,
        bytes_accessed=B * S * D * (jnp.dtype(x.dtype).itemsize + out_itemsize)
                       + S * D * jnp.dtype(pe_src.dtype).itemsize,
    )
    alias = {0: 0} if (donate_x and x.dtype == out_dtype) else {}

    out_flat = pl.pallas_call(
        _pos_enc_kernel,
        out_shape=jax.ShapeDtypeStruct((B, S * D), out_dtype),
        grid_spec=pltpu.PrefetchScalarGridSpec(
            num_scalar_prefetch=0,
            grid=(num_s,),
            in_specs=[
                pl.BlockSpec((B, L), lambda s: (0, s)),   # x: full batch, one folded seq tile
                pl.BlockSpec((1, L), lambda s: (0, s)),   # pe: broadcast over batch in-kernel
            ],
            out_specs=pl.BlockSpec((B, L), lambda s: (0, s)),
        ),
        compiler_params=pltpu.CompilerParams(
            dimension_semantics=("parallel",),
            vmem_limit_bytes=_vmem_limit_for(block_bytes),
        ),
        cost_estimate=cost,
        input_output_aliases=alias,
    )(x_flat, pe_flat)
    return out_flat.reshape(B, S, D)


def positional_encoding(x: jnp.ndarray, pe_table: jnp.ndarray, *, donate_x: bool = False) -> jnp.ndarray:
    """x: (B, S, D); pe_table: (1, max_len, D). Returns x + pe[:, :S, :] in the promoted dtype."""
    B, S, D = x.shape
    max_len = pe_table.shape[1]
    if S > max_len:
        raise ValueError(f"sequence length {S} exceeds positional table max_len {max_len}")
    if pe_table.shape[2] != D:
        raise ValueError(f"d_model mismatch: x has {D}, pe table has {pe_table.shape[2]}")

    # Match torch type promotion (e.g. bf16 x + f32 pe -> f32 output).
    out_dtype = jnp.promote_types(x.dtype, pe_table.dtype)

    vmem_cap = _vmem_capacity_bytes()
    # ~6.4 MiB blocks on v7x (64 MiB VMEM), 8 MiB on v5e/v6e (128 MiB VMEM).
    target_bytes = int(min(8 << 20, max(2 << 20, vmem_cap // 10)))

    if D % 128 == 0:
        return _pos_enc_3d(x, pe_table, out_dtype, target_bytes, donate_x)
    return _pos_enc_folded(x, pe_table, out_dtype, target_bytes, donate_x)


if __name__ == "__main__":
    key = jax.random.PRNGKey(0)

    # 1) Small/odd d_model (folded lane-dense path), f32 — matches the original demo shapes.
    B, S, D = 2, 8, 32
    x = jax.random.normal(key, (B, S, D), dtype=jnp.float32)
    pe_table = make_positional_encoding_table(d_model=D, max_len=5000)
    out = jax.block_until_ready(positional_encoding(x, pe_table))
    ref = x + pe_table[:, :S, :]
    np.testing.assert_allclose(np.asarray(out), np.asarray(ref), rtol=1e-6, atol=1e-6)

    # 2) Transformer-width d_model (3-D path), f32.
    B2, S2, D2 = 2, 16, 128
    x2 = jax.random.normal(jax.random.PRNGKey(1), (B2, S2, D2), dtype=jnp.float32)
    pe_table2 = make_positional_encoding_table(d_model=D2, max_len=512)
    out2 = jax.block_until_ready(positional_encoding(x2, pe_table2))
    ref2 = x2 + pe_table2[:, :S2, :]
    np.testing.assert_allclose(np.asarray(out2), np.asarray(ref2), rtol=1e-6, atol=1e-6)

    # 3) Mixed-precision check: bf16 x + f32 pe -> f32 output (torch promotion semantics).
    x3 = x2.astype(jnp.bfloat16)
    out3 = jax.block_until_ready(positional_encoding(x3, pe_table2))
    ref3 = x3.astype(jnp.float32) + pe_table2[:, :S2, :]
    assert out3.dtype == jnp.float32
    np.testing.assert_allclose(np.asarray(out3), np.asarray(ref3), rtol=1e-6, atol=1e-6)

    print("KERNEL_OK")
</pallas_src>

<mosaic_0001>
module attributes {stable_mosaic.version = 11 : i64} {
  func.func @_pos_enc_kernel(%arg0: i32, %arg1: memref<2x256xf32, #tpu.memory_space<vmem>>, %arg2: memref<1x256xf32, #tpu.memory_space<vmem>>, %arg3: memref<2x256xf32, #tpu.memory_space<vmem>>) attributes {dimension_semantics = [#tpu.dimension_semantics<parallel>], iteration_bounds = array<i64: 1>, scalar_prefetch = 0 : i64, scratch_operands = 0 : i64, tpu.core_type = #tpu.core_type<tc>, window_params = [{transform_indices = @transform_0, window_bounds = array<i64: 2, 256>}, {transform_indices = @transform_1, window_bounds = array<i64: 1, 256>}, {transform_indices = @transform_2, window_bounds = array<i64: 2, 256>}]} {
    %c0 = arith.constant 0 : index
    %c0_0 = arith.constant 0 : index
    %0 = vector.load %arg1[%c0, %c0_0] : memref<2x256xf32, #tpu.memory_space<vmem>>, vector<2x256xf32>
    %c0_1 = arith.constant 0 : index
    %c0_2 = arith.constant 0 : index
    %1 = vector.load %arg2[%c0_1, %c0_2] : memref<1x256xf32, #tpu.memory_space<vmem>>, vector<1x256xf32>
    %2 = vector.broadcast %1 : vector<1x256xf32> to vector<2x256xf32>
    %3 = arith.addf %0, %2 : vector<2x256xf32>
    %c0_3 = arith.constant 0 : index
    %c0_4 = arith.constant 0 : index
    %4 = vector.load %arg3[%c0_3, %c0_4] : memref<2x256xf32, #tpu.memory_space<vmem>>, vector<2x256xf32>
    tpu.vector_store %arg3[%c0_3, %c0_4], %3 {strides = array<i32>} : memref<2x256xf32, #tpu.memory_space<vmem>>, vector<2x256xf32>,
    return
  }
  func.func @transform_0(%arg0: i32) -> (i32, i32) {
    %c0_i32 = arith.constant 0 : i32
    %c0_i32_0 = arith.constant 0 : i32
    return %c0_i32, %arg0 : i32, i32
  }
  func.func @transform_1(%arg0: i32) -> (i32, i32) {
    %c0_i32 = arith.constant 0 : i32
    %c0_i32_0 = arith.constant 0 : i32
    return %c0_i32, %arg0 : i32, i32
  }
  func.func @transform_2(%arg0: i32) -> (i32, i32) {
    %c0_i32 = arith.constant 0 : i32
    %c0_i32_0 = arith.constant 0 : i32
    return %c0_i32, %arg0 : i32, i32
  }
}

</mosaic_0001>

<llo_original>
// kernel: tpu_custom_call.1
$region0: #{tpu_custom_call.1}
  #allocation0 [shape = 'u32[]', space=smem, size = 0x4, offset = 0x4, fixed_abs, tag = 'smem constant byte address 0x4 - core index']
  #allocation1 [shape = 'u32[144,128]{1,0:T(1,128)}', space=vmem, size = 0x12000, scoped, tag = 'internal scratch']
  %s0 = inlined_call_operand.hbm [shape: f32[2,256], index: 0, kind: input, shape index: {}]
  %s1 = inlined_call_operand.hbm [shape: f32[1,160000], index: 1, kind: input, shape index: {}]
  %s2 = inlined_call_operand.hbm [shape: f32[2,256], index: 2, kind: output, shape index: {}]
  %s3 = sld [smem:[#allocation0]]
  $region26: #{tpu_custom_call.1} parent=0
    _
  %s5 = ssub.s32 1, %s3
  %s6 = scalar_select 0, %s5, %s3
  $region1: #{tpu_custom_call.1} parent=0
    #allocation2 [shape = 'u8[2048]{0}', space=vmem, size = 0x800, scoped, tag = 'input window, operand 0, single buffered']
    #allocation3 [shape = 's32[1]{0}', space=sflag, size = 0x4, scoped, tag = 'scoped memory for tpu_custom_call.1']
    #allocation4 [shape = 's32[1]{0}', space=sflag, size = 0x4, scoped, tag = 'scoped memory for tpu_custom_call.1']
    #allocation5 [shape = 'u8[1024]{0}', space=vmem, size = 0x400, scoped, tag = 'input window, operand 1, single buffered']
    #allocation6 [shape = 's32[1]{0}', space=sflag, size = 0x4, scoped, tag = 'scoped memory for tpu_custom_call.1']
    #allocation7 [shape = 'u8[2048]{0}', space=vmem, size = 0x800, scoped, tag = 'output window, operand 0, single buffered']
    %7 = vsyncpa [#allocation3], 0
    %8 = vsyncpa [#allocation6], 0
    %9 = vsyncpa [#allocation4], 0
    // Predicated region
    $region2: #{tpu_custom_call.1} parent=1 // pred_check
      _
    $region3: #{tpu_custom_call.1} parent=1 // pred_check_branch
      %11 = sbr.rel (0) target = $region5
    $region4: #{tpu_custom_call.1} parent=1 // pred_region
      %s13 = ssub.s32 64, 64
      %14 = vsyncadd [#allocation3], %s13
      %s16 = sshll.u32 [#allocation2], 4
      %s17 = int_to_ptr.vmem [resolvable:$true] %s16
      %19 = dma.hbm_to_vmem [thread:$0]  %s0, 64, %s17, [#allocation3]
    $region5: #{tpu_custom_call.1} parent=1 // pred_fallthru
      _
    // Predicated region
    $region6: #{tpu_custom_call.1} parent=1 // pred_check
      _
    $region7: #{tpu_custom_call.1} parent=1 // pred_check_branch
      %21 = sbr.rel (0) target = $region9
    $region8: #{tpu_custom_call.1} parent=1 // pred_region
      %s23 = ssub.s32 32, 32
      %24 = vsyncadd [#allocation6], %s23
      %s26 = sshll.u32 [#allocation5], 4
      %s27 = int_to_ptr.vmem [resolvable:$true] %s26
      %29 = dma.hbm_to_vmem [thread:$0]  %s1, 32, %s27, [#allocation6]
    $region9: #{tpu_custom_call.1} parent=1 // pred_fallthru
      _
    // Predicated region
    $region10: #{tpu_custom_call.1} parent=1 // pred_check
      _
    $region11: #{tpu_custom_call.1} parent=1 // pred_check_branch
      %31 = sbr.rel (0) target = $region13
    $region12: #{tpu_custom_call.1} parent=1 // pred_region
      %32 = dma.done [#allocation3], 64
    $region13: #{tpu_custom_call.1} parent=1 // pred_fallthru
      _
    // Predicated region
    $region14: #{tpu_custom_call.1} parent=1 // pred_check
      _
    $region15: #{tpu_custom_call.1} parent=1 // pred_check_branch
      %34 = sbr.rel (0) target = $region17
    $region16: #{tpu_custom_call.1} parent=1 // pred_region
      %35 = dma.done [#allocation6], 32
    $region17: #{tpu_custom_call.1} parent=1 // pred_fallthru
      _
    %v36 = vld [vmem:[#allocation2] sm:$0xf]
    %v37 = vld [vmem:[#allocation5] sm:$0x3]
    %v39 = vlaneseq
    %v40 = vshrl.u32 %v39, 7
    %v41 = vsub.s32 0, %v40
    %v42 = vrot.slane %v37, %v41
    %v43 = vlaneseq
    %v44 = vshrl.u32 %v43, 7
    %v45 = vsub.s32 1, %v44
    %v46 = vrot.slane %v37, %v45
    %v47 = vcombine.low %v42, %v46
    %v49 = vunpack.c.l.s4 1983009808
    %v50 = vunpack.c.0.s8 %v49
    %v51 = vlaneseq
    %v52 = vshrl.u32 %v51, 7
    %v53 = vsub.s32 %v50, %v52
    %v54 = vrot.slane %v47, %v53
    %v56 = vadd.f32 %v36, %v54
    %57 = vst [vmem:[#allocation7] sm:$0xf] %v56
    // Predicated region
    $region18: #{tpu_custom_call.1} parent=1 // pred_check
      _
    $region19: #{tpu_custom_call.1} parent=1 // pred_check_branch
      %59 = sbr.rel (0) target = $region21
    $region20: #{tpu_custom_call.1} parent=1 // pred_region
      %s61 = ssub.s32 64, 64
      %62 = vsyncadd [#allocation4], %s61
      %s64 = sshll.u32 [#allocation7], 4
      %s65 = int_to_ptr.vmem [resolvable:$true] %s64
      %67 = dma.vmem_to_hbm [thread:$0]  %s65, 64, %s2, [#allocation4]
    $region21: #{tpu_custom_call.1} parent=1 // pred_fallthru
      _
    // Predicated region
    $region22: #{tpu_custom_call.1} parent=1 // pred_check
      _
    $region23: #{tpu_custom_call.1} parent=1 // pred_check_branch
      %69 = sbr.rel (0) target = $region25
    $region24: #{tpu_custom_call.1} parent=1 // pred_region
      %70 = dma.done [#allocation4], 64
    $region25: #{tpu_custom_call.1} parent=1 // pred_fallthru
      _
    %71 = vsyncpa [#allocation3], 1
    %72 = vsyncpa [#allocation6], 1
    %73 = vsyncpa [#allocation4], 1

</llo_original>
